<compile_context>
chip_gen: v6e
topology: v6e:2x2x1
jax: 0.10.0
libtpu: 0.0.40
codegen_flags: <defaults>
</compile_context>

<pallas_src>
import functools
import math

import jax
import jax.numpy as jnp
from jax.experimental import pallas as pl
from jax.experimental.pallas import tpu as pltpu


LANE = 128
MAX_COLS = 4096                        # widest lane-dense slab we try for
TARGET_TILE_BYTES = 4 * 1024 * 1024    # 4 MiB/tile; 4 buffers -> ~16 MiB VMEM
MIN_TILE_BYTES = 512 * 1024            # don't shrink tiles below this chasing grid steps
VMEM_LIMIT_BYTES = 32 * 1024 * 1024    # raise v5e's 16 MiB default; default on v6e/v7x


# ----------------------------- Pallas kernels ------------------------------


def _quant_kernel(x_ref, o_ref, *, act_clamp, act_scale, inv_scale, clamp_native):
    # clamp -> round(x*scale) * (1/scale).
    x = x_ref[...]
    if clamp_native:
        # 0 and act_clamp are exactly representable in the input dtype:
        # clamping before the upcast saves VALU work on bf16 inputs.
        x = jnp.clip(x, jnp.asarray(0, x.dtype), jnp.asarray(act_clamp, x.dtype))
        x = x.astype(jnp.float32)
    else:
        x = jnp.clip(x.astype(jnp.float32), 0.0, act_clamp)
    # Keep the round + rescale in f32: 255*x needs more mantissa than bf16 has.
    o_ref[...] = (jnp.round(x * act_scale) * inv_scale).astype(o_ref.dtype)


def _relu_kernel(x_ref, o_ref):
    x = x_ref[...]
    o_ref[...] = jnp.maximum(x, jnp.zeros_like(x))


# ------------------------------ JAX wrapper --------------------------------


def _choose_cols(n_elem):
    """Pick a lane-friendly column count that divides n_elem."""
    if n_elem <= 0:
        return 1
    if n_elem % LANE == 0:
        # Fast path: largest multiple of 128 (<= MAX_COLS) dividing n_elem
        # -> unmasked, full-lane stores.
        for c in range(MAX_COLS, LANE - 1, -LANE):
            if n_elem % c == 0:
                return c
        return LANE
    # Non-128-multiple element count: largest divisor <= MAX_COLS.  The last
    # dim equals the full array extent so the (8,128) BlockSpec rule is
    # satisfied; partial lanes go through masked stores (slower, but avoids
    # any extra pad/concat/slice HBM passes).
    best = 1
    for d in range(1, int(math.isqrt(n_elem)) + 1):
        if n_elem % d == 0:
            if d <= MAX_COLS and d > best:
                best = d
            q = n_elem // d
            if q <= MAX_COLS and q > best:
                best = q
    return best


def _tile_rows(rows, cols, dtype):
    """Row-tile sized to ~TARGET_TILE_BYTES, sublane-packed, >=2 grid steps."""
    itemsize = jnp.dtype(dtype).itemsize
    sub = max(8, 32 // itemsize)       # 8 for f32, 16 for bf16, 32 for int8/fp8
    if rows <= sub:
        return rows                    # full extent (allowed by BlockSpec rules)

    tr = TARGET_TILE_BYTES // (cols * itemsize)
    tr = max(sub, (tr // sub) * sub)
    tr = min(rows, tr)

    def steps(t):
        return -(-rows // t)

    # Guarantee >= 2 grid steps so both v7x TensorCores get work.
    while steps(tr) < 2 and tr > sub:
        tr = max(sub, (((tr + 1) // 2) // sub) * sub)
    # Nudge toward >= 8 steps while the tile stays comfortably large.
    while steps(tr) < 8 and tr > sub and (tr // 2) * cols * itemsize >= MIN_TILE_BYTES:
        tr = max(sub, ((tr // 2) // sub) * sub)
    return tr


def _run_elementwise(kernel, x2d, flops_per_elem):
    rows, cols = x2d.shape
    tr = _tile_rows(rows, cols, x2d.dtype)
    grid = (pl.cdiv(rows, tr),)        # ragged last block: Pallas masks write-back
    n_bytes = rows * cols * jnp.dtype(x2d.dtype).itemsize
    return pl.pallas_call(
        kernel,
        out_shape=jax.ShapeDtypeStruct((rows, cols), x2d.dtype),
        grid=grid,
        in_specs=[pl.BlockSpec((tr, cols), lambda i: (i, 0))],
        out_specs=pl.BlockSpec((tr, cols), lambda i: (i, 0)),
        # NOTE: no input_output_aliases -- aliasing a still-live (un-donated)
        # input would make XLA insert a defensive full-tensor copy.
        compiler_params=pltpu.CompilerParams(
            # Row tiles are independent -> shard grid across TCs on v7x;
            # neutral on single-TC v5e/v6e.
            dimension_semantics=("parallel",),
            vmem_limit_bytes=VMEM_LIMIT_BYTES,
        ),
        cost_estimate=pl.CostEstimate(
            flops=flops_per_elem * rows * cols,
            transcendentals=0,
            bytes_accessed=2 * n_bytes,
        ),
    )(x2d)


class ActQuantWRPN:
    """JAX/Pallas port of the PyTorch ActQuantWRPN module (forward only)."""

    def __init__(self, act_quant=False, act_bitwidth=8, act_clamp=1):
        self.act_quant = act_quant
        self.act_bitwidth = act_bitwidth
        self.act_clamp = float(act_clamp)
        self.act_scale = float(2 ** act_bitwidth - 1)
        self.quatize_during_training = False
        self.noise_during_training = False
        self.training = False  # eval mode by default (like module.eval())

    def __call__(self, x):
        orig_shape = x.shape
        n_elem = math.prod(orig_shape) if orig_shape else 1
        if n_elem == 0:
            return x

        use_quant = self.act_quant and (
            (not self.training) or (self.training and self.quatize_during_training)
        )
        if use_quant:
            # Trace-time check: is act_clamp exactly representable in x.dtype?
            clamp_native = (
                float(jnp.asarray(self.act_clamp, dtype=x.dtype).astype(jnp.float32))
                == self.act_clamp
            )
            kernel = functools.partial(
                _quant_kernel,
                act_clamp=self.act_clamp,
                act_scale=self.act_scale,
                inv_scale=1.0 / self.act_scale,
                clamp_native=clamp_native,
            )
            flops_per_elem = 5
        else:
            kernel = _relu_kernel
            flops_per_elem = 1

        # One reshape in / one reshape out (layout plumbing only, no pad passes).
        cols = _choose_cols(n_elem)
        x2d = x.reshape(n_elem // cols, cols)
        out2d = _run_elementwise(kernel, x2d, flops_per_elem)
        return out2d.reshape(orig_shape)


# ------------------------------- reference ---------------------------------


def _ref_forward(x, module: ActQuantWRPN):
    use_quant = module.act_quant and (
        (not module.training)
        or (module.training and module.quatize_during_training)
    )
    if use_quant:
        xf = x.astype(jnp.float32)
        xc = jnp.clip(xf, 0.0, module.act_clamp)
        # PyTorch does `1/scale * round(x*scale)`.
        return (jnp.round(xc * module.act_scale) * (1.0 / module.act_scale)).astype(x.dtype)
    return jnp.maximum(x, jnp.zeros_like(x))


# --------------------------------- main -------------------------------------


if __name__ == "__main__":
    key = jax.random.PRNGKey(0)
    # small NCHW activation tensor
    x = jax.random.normal(key, (2, 4, 16, 16), dtype=jnp.float32)

    # Path 1: quantization path (act_quant=True, eval mode)
    mod_q = ActQuantWRPN(act_quant=True, act_bitwidth=8, act_clamp=1)
    out_q = jax.block_until_ready(mod_q(x))
    ref_q = _ref_forward(x, mod_q)
    assert out_q.shape == x.shape and out_q.dtype == x.dtype
    assert jnp.max(jnp.abs(out_q - ref_q)) < 1e-6

    # Path 2: default path (act_quant=False) -> ReLU
    mod_r = ActQuantWRPN(act_quant=False)
    out_r = jax.block_until_ready(mod_r(x))
    ref_r = _ref_forward(x, mod_r)
    assert jnp.max(jnp.abs(out_r - ref_r)) < 1e-6

    # Path 3: bf16 input (native dtype through HBM, clamp in bf16, quant math f32)
    xb = jax.random.normal(jax.random.PRNGKey(1), (2, 8, 16, 16), dtype=jnp.bfloat16)
    out_b = jax.block_until_ready(mod_q(xb))
    ref_b = _ref_forward(xb, mod_q)
    assert out_b.shape == xb.shape and out_b.dtype == xb.dtype
    assert jnp.max(jnp.abs(out_b.astype(jnp.float32) - ref_b.astype(jnp.float32))) < 1e-2

    # Path 4: larger NCHW tensor that exercises the multi-tile (ragged) grid.
    xl = jax.random.normal(jax.random.PRNGKey(2), (4, 64, 56, 56), dtype=jnp.float32)
    out_l = jax.block_until_ready(mod_q(xl))
    ref_l = _ref_forward(xl, mod_q)
    assert out_l.shape == xl.shape and out_l.dtype == xl.dtype
    assert jnp.max(jnp.abs(out_l - ref_l)) < 1e-6

    # Path 5: element count NOT a multiple of 128 (masked-store fallback, no pad pass).
    xo = jax.random.normal(jax.random.PRNGKey(3), (3, 5, 7, 9), dtype=jnp.float32)
    out_o = jax.block_until_ready(mod_q(xo))
    ref_o = _ref_forward(xo, mod_q)
    assert out_o.shape == xo.shape and out_o.dtype == xo.dtype
    assert jnp.max(jnp.abs(out_o - ref_o)) < 1e-6

    print("KERNEL_OK")
</pallas_src>

<mosaic_0001>
module attributes {stable_mosaic.version = 11 : i64} {
  func.func @_quant_kernel(%arg0: i32, %arg1: memref<1x2048xf32, #tpu.memory_space<vmem>>, %arg2: memref<1x2048xf32, #tpu.memory_space<vmem>>) attributes {dimension_semantics = [#tpu.dimension_semantics<parallel>], iteration_bounds = array<i64: 1>, scalar_prefetch = 0 : i64, scratch_operands = 0 : i64, tpu.core_type = #tpu.core_type<tc>, window_params = [{transform_indices = @transform_0, window_bounds = array<i64: 1, 2048>}, {transform_indices = @transform_1, window_bounds = array<i64: 1, 2048>}]} {
    %c0 = arith.constant 0 : index
    %c0_0 = arith.constant 0 : index
    %0 = vector.load %arg1[%c0, %c0_0] : memref<1x2048xf32, #tpu.memory_space<vmem>>, vector<1x2048xf32>
    %cst = arith.constant 0.000000e+00 : f32
    %cst_1 = arith.constant 1.000000e+00 : f32
    %1 = vector.broadcast %cst : f32 to vector<1x2048xf32>
    %2 = arith.maximumf %1, %0 : vector<1x2048xf32>
    %3 = vector.broadcast %cst_1 : f32 to vector<1x2048xf32>
    %4 = arith.minimumf %3, %2 : vector<1x2048xf32>
    %cst_2 = arith.constant 2.550000e+02 : f32
    %5 = vector.broadcast %cst_2 : f32 to vector<1x2048xf32>
    %6 = arith.mulf %4, %5 : vector<1x2048xf32>
    %7 = math.roundeven %6 : vector<1x2048xf32>
    %cst_3 = arith.constant 0.00392156886 : f32
    %8 = vector.broadcast %cst_3 : f32 to vector<1x2048xf32>
    %9 = arith.mulf %7, %8 : vector<1x2048xf32>
    %c0_4 = arith.constant 0 : index
    %c0_5 = arith.constant 0 : index
    %10 = vector.load %arg2[%c0_4, %c0_5] : memref<1x2048xf32, #tpu.memory_space<vmem>>, vector<1x2048xf32>
    tpu.vector_store %arg2[%c0_4, %c0_5], %9 {strides = array<i32>} : memref<1x2048xf32, #tpu.memory_space<vmem>>, vector<1x2048xf32>,
    return
  }
  func.func @transform_0(%arg0: i32) -> (i32, i32) {
    %c0_i32 = arith.constant 0 : i32
    %c0_i32_0 = arith.constant 0 : i32
    return %arg0, %c0_i32 : i32, i32
  }
  func.func @transform_1(%arg0: i32) -> (i32, i32) {
    %c0_i32 = arith.constant 0 : i32
    %c0_i32_0 = arith.constant 0 : i32
    return %arg0, %c0_i32 : i32, i32
  }
}

</mosaic_0001>

<llo_original>
// kernel: tpu_custom_call.1
$region0: #{tpu_custom_call.1}
  #allocation0 [shape = 'u32[]', space=smem, size = 0x4, offset = 0x4, fixed_abs, tag = 'smem constant byte address 0x4 - core index']
  #allocation1 [shape = 'u32[144,128]{1,0:T(1,128)}', space=vmem, size = 0x12000, scoped, tag = 'internal scratch']
  %s0 = inlined_call_operand.hbm [shape: f32[1,2048], index: 0, kind: input, shape index: {}]
  %s1 = inlined_call_operand.hbm [shape: f32[1,2048], index: 1, kind: output, shape index: {}]
  %s2 = sld [smem:[#allocation0]]
  $region18: #{tpu_custom_call.1} parent=0
    _
  %s4 = ssub.s32 1, %s2
  %s5 = scalar_select 0, %s4, %s2
  $region1: #{tpu_custom_call.1} parent=0
    #allocation2 [shape = 'u8[8192]{0}', space=vmem, size = 0x2000, scoped, tag = 'input window, operand 0, single buffered']
    #allocation3 [shape = 's32[1]{0}', space=sflag, size = 0x4, scoped, tag = 'scoped memory for tpu_custom_call.1']
    #allocation4 [shape = 's32[1]{0}', space=sflag, size = 0x4, scoped, tag = 'scoped memory for tpu_custom_call.1']
    #allocation5 [shape = 'u8[8192]{0}', space=vmem, size = 0x2000, scoped, tag = 'output window, operand 0, single buffered']
    %6 = vsyncpa [#allocation3], 0
    %7 = vsyncpa [#allocation4], 0
    // Predicated region
    $region2: #{tpu_custom_call.1} parent=1 // pred_check
      _
    $region3: #{tpu_custom_call.1} parent=1 // pred_check_branch
      %9 = sbr.rel (0) target = $region5
    $region4: #{tpu_custom_call.1} parent=1 // pred_region
      %s11 = ssub.s32 256, 256
      %12 = vsyncadd [#allocation3], %s11
      %s14 = sshll.u32 [#allocation2], 4
      %s15 = int_to_ptr.vmem [resolvable:$true] %s14
      %17 = dma.hbm_to_vmem [thread:$0]  %s0, 256, %s15, [#allocation3]
    $region5: #{tpu_custom_call.1} parent=1 // pred_fallthru
      _
    // Predicated region
    $region6: #{tpu_custom_call.1} parent=1 // pred_check
      _
    $region7: #{tpu_custom_call.1} parent=1 // pred_check_branch
      %19 = sbr.rel (0) target = $region9
    $region8: #{tpu_custom_call.1} parent=1 // pred_region
      %20 = dma.done [#allocation3], 256
    $region9: #{tpu_custom_call.1} parent=1 // pred_fallthru
      _
    %v21 = vld [vmem:[#allocation2] sm:$0xff]
    %v22 = vld [vmem:[#allocation2 + $0x8] sm:$0xff]
    %v23 = vmax.f32 %v21, 0.0
    %v24 = vmax.f32 %v22, 0.0
    %v25 = vmin.f32 %v23, 1.0
    %v26 = vmin.f32 %v24, 1.0
    %v27 = vmul.f32 %v25, 255.0
    %v28 = vmul.f32 %v26, 255.0
    %v29 = vround.ne.pseudo %v27
    %v30 = vround.ne.pseudo %v28
    %v31 = vmul.f32 %v29, 0.003921569
    %v32 = vmul.f32 %v30, 0.003921569
    %33 = vst [vmem:[#allocation5] sm:$0xff] %v31
    %34 = vst [vmem:[#allocation5 + $0x8] sm:$0xff] %v32
    // Predicated region
    $region10: #{tpu_custom_call.1} parent=1 // pred_check
      _
    $region11: #{tpu_custom_call.1} parent=1 // pred_check_branch
      %36 = sbr.rel (0) target = $region13
    $region12: #{tpu_custom_call.1} parent=1 // pred_region
      %s38 = ssub.s32 256, 256
      %39 = vsyncadd [#allocation4], %s38
      %s41 = sshll.u32 [#allocation5], 4
      %s42 = int_to_ptr.vmem [resolvable:$true] %s41
      %44 = dma.vmem_to_hbm [thread:$0]  %s42, 256, %s1, [#allocation4]
    $region13: #{tpu_custom_call.1} parent=1 // pred_fallthru
      _
    // Predicated region
    $region14: #{tpu_custom_call.1} parent=1 // pred_check
      _
    $region15: #{tpu_custom_call.1} parent=1 // pred_check_branch
      %46 = sbr.rel (0) target = $region17
    $region16: #{tpu_custom_call.1} parent=1 // pred_region
      %47 = dma.done [#allocation4], 256
    $region17: #{tpu_custom_call.1} parent=1 // pred_fallthru
      _
    %48 = vsyncpa [#allocation3], 1
    %49 = vsyncpa [#allocation4], 1

</llo_original>
